<compile_context>
chip_gen: v7x
topology: tpu7x:2x2x1
jax: 0.10.0
libtpu: 0.0.40
codegen_flags: <defaults>
</compile_context>

<pallas_src>
import math

import jax
import jax.numpy as jnp
from jax.experimental import pallas as pl
from jax.experimental.pallas import tpu as pltpu


def _round_up(x, m):
    return ((x + m - 1) // m) * m


def _pick_tile(n, target, align):
    """Full dim if small; otherwise the largest divisor of n that is <= target and
    a multiple of `align` (sub-tiles of the last two block dims must be (8,128)
    aligned). Falls back to the full dim, which is always legal."""
    if n <= target:
        return n
    for t in range(target, align - 1, -1):
        if n % t == 0 and t % align == 0:
            return t
    return n


def _z_kernel(x_ref, w_ref, bt_ref, z_ref):
    # Z = X @ W + B.T   (F_out already padded to a lane-dense width)
    z_ref[...] = (
        jnp.dot(x_ref[...], w_ref[...], preferred_element_type=jnp.float32)
        + bt_ref[...]
    )


def _ac_bmm_kernel(a_ref, c_ref, z_ref, o_ref, acc_ref):
    """out[:, i-tile, :] += (A[:, i-tile, j-tile] * C[i-tile, j-tile]) @ Z[j-tile].

    a_ref  : (K, tm, tn)   all edge types for this (row, contraction) tile
    c_ref  : (tm, tn)      coupling (broadcast over K)
    z_ref  : (tn, Fp)      node features after X @ W + B.T
    o_ref  : (K, tm, Fp)   output tile (resident across the j axis)
    acc_ref: (K*tm, Fp)    f32 VMEM accumulator
    """
    j = pl.program_id(1)

    @pl.when(j == 0)
    def _():
        acc_ref[...] = jnp.zeros_like(acc_ref)

    k, tm, tn = a_ref.shape
    # Fuse the A*C scale per tile, then merge the leading (K, tm) dims so the whole
    # edge-type batch goes through a single MXU matmul.
    ac = (a_ref[...] * c_ref[...]).reshape(k * tm, tn)
    acc_ref[...] += jnp.dot(ac, z_ref[...], preferred_element_type=jnp.float32)

    @pl.when(j == pl.num_programs(1) - 1)
    def _():
        o_ref[...] = acc_ref[...].reshape(o_ref.shape).astype(o_ref.dtype)


def graph_convolution(X, A, C, W, B):
    """Pallas GraphConvolution forward.

    X: (N, F_in), A: (K, N, N), C: (N, N), W: (F_in, F_out), B: (F_out, 1)
    returns (K, N, F_out), float32
    """
    N, F_in = X.shape
    K = A.shape[0]
    F_out = W.shape[1]

    # Lane-dense output: pad the output-feature axis to a multiple of 128.
    Fp = _round_up(F_out, 128)
    if Fp != F_out:
        W_p = jnp.pad(W, ((0, 0), (0, Fp - F_out)))
        Bt_p = jnp.pad(B.T, ((0, 0), (0, Fp - F_out)))
    else:
        W_p, Bt_p = W, B.T

    # ---- Stage 1: Z = X @ W + B.T (hoisted so the main kernel's row axis can be parallel).
    Z = pl.pallas_call(
        _z_kernel,
        out_shape=jax.ShapeDtypeStruct((N, Fp), jnp.float32),
        grid_spec=pltpu.PrefetchScalarGridSpec(
            num_scalar_prefetch=0,
            grid=(1,),
            in_specs=[
                pl.BlockSpec((N, F_in), lambda i: (0, 0)),
                pl.BlockSpec((F_in, Fp), lambda i: (0, 0)),
                pl.BlockSpec((1, Fp), lambda i: (0, 0)),
            ],
            out_specs=pl.BlockSpec((N, Fp), lambda i: (0, 0)),
        ),
        compiler_params=pltpu.CompilerParams(dimension_semantics=("arbitrary",)),
    )(X, W_p, Bt_p)

    # ---- Stage 2: out[k] = (A[k] * C) @ Z, all edge types fused per grid step.
    tm = _pick_tile(N, 512, 8)      # row tile   (second-to-last block dim)
    tn = _pick_tile(N, 512, 128)    # contraction tile (last block dim of A / C)

    # Explicit scoped-VMEM budget from the block footprint (x2 for double buffering)
    # plus the accumulator, with generous-but-safe clamps for v5e/v6e/v7x.
    need = 2 * 4 * (K * tm * tn + tm * tn + tn * Fp + K * tm * Fp) + 4 * K * tm * Fp
    vmem_limit = int(min(max(2 * need, 32 * 1024 * 1024), 60 * 1024 * 1024))

    out_p = pl.pallas_call(
        _ac_bmm_kernel,
        out_shape=jax.ShapeDtypeStruct((K, N, Fp), jnp.float32),
        grid_spec=pltpu.PrefetchScalarGridSpec(
            num_scalar_prefetch=0,
            grid=(N // tm, N // tn),
            in_specs=[
                pl.BlockSpec((K, tm, tn), lambda i, j: (0, i, j)),  # A (all K)
                pl.BlockSpec((tm, tn), lambda i, j: (i, j)),        # C
                pl.BlockSpec((tn, Fp), lambda i, j: (j, 0)),        # Z
            ],
            out_specs=pl.BlockSpec((K, tm, Fp), lambda i, j: (0, i, 0)),
            scratch_shapes=[pltpu.VMEM((K * tm, Fp), jnp.float32)],
        ),
        compiler_params=pltpu.CompilerParams(
            dimension_semantics=("parallel", "arbitrary"),
            vmem_limit_bytes=vmem_limit,
        ),
    )(A, C, Z)

    return out_p[:, :, :F_out] if Fp != F_out else out_p


if __name__ == "__main__":
    # Module sizes (small, consistent with the forward pass)
    nnodes, in_features, out_features, n_edge_types = 16, 32, 32, 3

    key = jax.random.PRNGKey(0)
    kW, kB, kX, kA, kC = jax.random.split(key, 5)

    # Deterministic parameter init matching reset_parameters():
    # uniform(-stdv, stdv) with stdv = 1/sqrt(out_features)
    stdv = 1.0 / math.sqrt(out_features)
    W = jax.random.uniform(kW, (in_features, out_features), jnp.float32,
                           minval=-stdv, maxval=stdv)
    B = jax.random.uniform(kB, (out_features, 1), jnp.float32,
                           minval=-stdv, maxval=stdv)

    # Example inputs
    X = jax.random.normal(kX, (nnodes, in_features), jnp.float32)
    A = jax.random.uniform(kA, (n_edge_types, nnodes, nnodes), jnp.float32)
    C = jax.random.uniform(kC, (nnodes, nnodes), jnp.float32)

    out = graph_convolution(X, A, C, W, B)
    out = jax.block_until_ready(out)

    # Pure-JAX reference for sanity
    Z_ref = X @ W + B.T
    ref = jnp.einsum("kij,jf->kif", A * C[None, :, :], Z_ref)
    assert out.shape == (n_edge_types, nnodes, out_features)
    assert jnp.allclose(out, ref, atol=1e-4, rtol=1e-4)

    print("KERNEL_OK")
</pallas_src>

<mosaic_0001>
module attributes {stable_mosaic.version = 11 : i64} {
  func.func @_z_kernel(%arg0: i32, %arg1: memref<16x32xf32, #tpu.memory_space<vmem>>, %arg2: memref<32x128xf32, #tpu.memory_space<vmem>>, %arg3: memref<1x128xf32, #tpu.memory_space<vmem>>, %arg4: memref<16x128xf32, #tpu.memory_space<vmem>>) attributes {dimension_semantics = [#tpu.dimension_semantics<arbitrary>], iteration_bounds = array<i64: 1>, scalar_prefetch = 0 : i64, scratch_operands = 0 : i64, tpu.core_type = #tpu.core_type<tc>, window_params = [{pipeline_mode = #tpu.pipeline_mode<synchronous>, transform_indices = @transform_0, window_bounds = array<i64: 16, 32>}, {pipeline_mode = #tpu.pipeline_mode<synchronous>, transform_indices = @transform_1, window_bounds = array<i64: 32, 128>}, {pipeline_mode = #tpu.pipeline_mode<synchronous>, transform_indices = @transform_2, window_bounds = array<i64: 1, 128>}, {pipeline_mode = #tpu.pipeline_mode<synchronous>, transform_indices = @transform_3, window_bounds = array<i64: 16, 128>}]} {
    %c0 = arith.constant 0 : index
    %c0_0 = arith.constant 0 : index
    %0 = vector.load %arg1[%c0, %c0_0] : memref<16x32xf32, #tpu.memory_space<vmem>>, vector<16x32xf32>
    %c0_1 = arith.constant 0 : index
    %c0_2 = arith.constant 0 : index
    %1 = vector.load %arg2[%c0_1, %c0_2] : memref<32x128xf32, #tpu.memory_space<vmem>>, vector<32x128xf32>
    %cst = arith.constant dense<0.000000e+00> : vector<16x128xf32>
    %2 = tpu.matmul %0, %1, %cst {dimension_numbers = #tpu.dot_dimension_numbers<[1], [0], [0], [1], [0, 0, 1, 1], [], []>} : vector<16x32xf32>, vector<32x128xf32>, vector<16x128xf32> -> vector<16x128xf32>
    %c0_3 = arith.constant 0 : index
    %c0_4 = arith.constant 0 : index
    %3 = vector.load %arg3[%c0_3, %c0_4] : memref<1x128xf32, #tpu.memory_space<vmem>>, vector<1x128xf32>
    %4 = vector.broadcast %3 : vector<1x128xf32> to vector<16x128xf32>
    %5 = arith.addf %2, %4 : vector<16x128xf32>
    %c0_5 = arith.constant 0 : index
    %c0_6 = arith.constant 0 : index
    %6 = vector.load %arg4[%c0_5, %c0_6] : memref<16x128xf32, #tpu.memory_space<vmem>>, vector<16x128xf32>
    tpu.vector_store %arg4[%c0_5, %c0_6], %5 {strides = array<i32>} : memref<16x128xf32, #tpu.memory_space<vmem>>, vector<16x128xf32>,
    return
  }
  func.func @transform_0(%arg0: i32) -> (i32, i32) {
    %c0_i32 = arith.constant 0 : i32
    %c0_i32_0 = arith.constant 0 : i32
    %c0_i32_1 = arith.constant 0 : i32
    return %c0_i32, %c0_i32_0 : i32, i32
  }
  func.func @transform_1(%arg0: i32) -> (i32, i32) {
    %c0_i32 = arith.constant 0 : i32
    %c0_i32_0 = arith.constant 0 : i32
    %c0_i32_1 = arith.constant 0 : i32
    return %c0_i32, %c0_i32_0 : i32, i32
  }
  func.func @transform_2(%arg0: i32) -> (i32, i32) {
    %c0_i32 = arith.constant 0 : i32
    %c0_i32_0 = arith.constant 0 : i32
    %c0_i32_1 = arith.constant 0 : i32
    return %c0_i32, %c0_i32_0 : i32, i32
  }
  func.func @transform_3(%arg0: i32) -> (i32, i32) {
    %c0_i32 = arith.constant 0 : i32
    %c0_i32_0 = arith.constant 0 : i32
    %c0_i32_1 = arith.constant 0 : i32
    return %c0_i32, %c0_i32_0 : i32, i32
  }
}

</mosaic_0001>

<llo_original>
// kernel: tpu_custom_call.1
$region0: #{tpu_custom_call.1}
  #allocation0 [shape = 'u32[]', space=smem, size = 0x4, offset = 0x4, fixed_abs, tag = 'smem constant byte address 0x4 - core index']
  #allocation1 [shape = 'u32[144,128]{1,0:T(1,128)}', space=vmem, size = 0x12000, scoped, tag = 'internal scratch']
  %s0 = inlined_call_operand.hbm [shape: f32[16,32], index: 0, kind: input, shape index: {}]
  %s1 = inlined_call_operand.hbm [shape: f32[32,128], index: 1, kind: input, shape index: {}]
  %s2 = inlined_call_operand.vmem [shape: f32[1,128], index: 2, kind: input, shape index: {}]
  %s3 = inlined_call_operand.hbm [shape: f32[16,128], index: 3, kind: output, shape index: {}]
  %s4 = sld [smem:[#allocation0]]
  $region30: #{tpu_custom_call.1} parent=0
    _
  %s6 = ssub.s32 1, %s4
  %s7 = scalar_select 0, %s6, %s4
  $region1: #{tpu_custom_call.1} parent=0
    #allocation2 [shape = 'u8[8192]{0}', space=vmem, size = 0x2000, scoped, tag = 'input window, operand 0, single buffered']
    #allocation3 [shape = 's32[1]{0}', space=sflag, size = 0x4, scoped, tag = 'scoped memory for tpu_custom_call.1']
    #allocation4 [shape = 's32[1]{0}', space=sflag, size = 0x4, scoped, tag = 'scoped memory for tpu_custom_call.1']
    #allocation5 [shape = 'u8[16384]{0}', space=vmem, size = 0x4000, scoped, tag = 'input window, operand 1, single buffered']
    #allocation6 [shape = 's32[1]{0}', space=sflag, size = 0x4, scoped, tag = 'scoped memory for tpu_custom_call.1']
    #allocation7 [shape = 'u8[8192]{0}', space=vmem, size = 0x2000, scoped, tag = 'output window, operand 0, single buffered']
    %8 = vsyncpa [#allocation3], 0
    %9 = vsyncpa [#allocation6], 0
    %10 = vsyncpa [#allocation4], 0
    // Predicated region
    $region2: #{tpu_custom_call.1} parent=1 // pred_check
      _
    $region3: #{tpu_custom_call.1} parent=1 // pred_check_branch
      %12 = sbr.rel (0) target = $region5
    $region4: #{tpu_custom_call.1} parent=1 // pred_region
      %s14 = ssub.s32 256, 256
      %15 = vsyncadd [#allocation3], %s14
      %s16 = sshll.u32 [#allocation2], 4
      %s17 = int_to_ptr.vmem [resolvable:$true] %s16
      %22 = dma.hbm_to_vmem [thread:$0]  %s0, 256, %s17, [#allocation3], 128, 128, 8
    $region5: #{tpu_custom_call.1} parent=1 // pred_fallthru
      _
    // Predicated region
    $region6: #{tpu_custom_call.1} parent=1 // pred_check
      _
    $region7: #{tpu_custom_call.1} parent=1 // pred_check_branch
      %24 = sbr.rel (0) target = $region9
    $region8: #{tpu_custom_call.1} parent=1 // pred_region
      %s26 = ssub.s32 512, 512
      %27 = vsyncadd [#allocation6], %s26
      %s28 = sshll.u32 [#allocation5], 4
      %s29 = int_to_ptr.vmem [resolvable:$true] %s28
      %34 = dma.hbm_to_vmem [thread:$0]  %s1, 512, %s29, [#allocation6], 128, 128, 8
    $region9: #{tpu_custom_call.1} parent=1 // pred_fallthru
      _
    // Predicated region
    $region10: #{tpu_custom_call.1} parent=1 // pred_check
      _
    $region11: #{tpu_custom_call.1} parent=1 // pred_check_branch
      %36 = sbr.rel (0) target = $region13
    $region12: #{tpu_custom_call.1} parent=1 // pred_region
      _
    $region13: #{tpu_custom_call.1} parent=1 // pred_fallthru
      _
    // Predicated region
    $region14: #{tpu_custom_call.1} parent=1 // pred_check
      _
    $region15: #{tpu_custom_call.1} parent=1 // pred_check_branch
      %38 = sbr.rel (0) target = $region17
    $region16: #{tpu_custom_call.1} parent=1 // pred_region
      %39 = dma.done [#allocation3], 256
    $region17: #{tpu_custom_call.1} parent=1 // pred_fallthru
      _
    // Predicated region
    $region18: #{tpu_custom_call.1} parent=1 // pred_check
      _
    $region19: #{tpu_custom_call.1} parent=1 // pred_check_branch
      %41 = sbr.rel (0) target = $region21
    $region20: #{tpu_custom_call.1} parent=1 // pred_region
      %42 = dma.done [#allocation6], 512
    $region21: #{tpu_custom_call.1} parent=1 // pred_fallthru
      _
    %v43 = vld [vmem:[#allocation2] sm:$0xff]
    %v44 = vld [vmem:[#allocation2 + $0x8] sm:$0xff]
    %v45 = vld [vmem:[#allocation5] sm:$0xff]
    %v46 = vld [vmem:[#allocation5 + $0x8] sm:$0xff]
    %v47 = vld [vmem:[#allocation5 + $0x10] sm:$0xff]
    %v48 = vld [vmem:[#allocation5 + $0x18] sm:$0xff]
    %v49 = vld [vmem:[%s2] sm:$0x1]
    %v51 = vlaneseq
    %v52 = vshrl.u32 %v51, 7
    %v53 = vsub.s32 0, %v52
    %v54 = vrot.slane %v49, %v53
    %vm56 = vcmask 261120
    %v58 = vsel %vm56, %v43, 0
    %v61 = vsel %vm56, %v44, 0
    %63 = vmatprep.subr.mxu0 0.0
    %64 = vmatpush1.msra.mxu0 %v45
    %65 = vmatprep.subr.mxu0 0.0
    %66 = vmatpush1.msra.mxu0 %v46
    %67 = vmatprep.subr.mxu0 0.0
    %68 = vmatpush1.msra.mxu0 %v47
    %69 = vmatprep.subr.mxu0 0.0
    %70 = vmatpush1.msra.mxu0 %v48
    %71 = vmatprep.subr.mxu0 0.0
    %72 = vmatpush1.msra.mxu0 0.0
    %73 = vmatprep.subr.mxu0 0.0
    %74 = vmatpush1.msra.mxu0 0.0
    %75 = vmatprep.subr.mxu0 0.0
    %76 = vmatpush1.msra.mxu0 0.0
    %77 = vmatprep.subr.mxu0 0.0
    %78 = vmatpush1.msra.mxu0 0.0
    %79 = vmatprep.subr.mxu0 0.0
    %80 = vmatpush1.msra.mxu0 0.0
    %81 = vmatprep.subr.mxu0 0.0
    %82 = vmatpush1.msra.mxu0 0.0
    %83 = vmatprep.subr.mxu0 0.0
    %84 = vmatpush1.msra.mxu0 0.0
    %85 = vmatprep.subr.mxu0 0.0
    %86 = vmatpush1.msra.mxu0 0.0
    %87 = vmatprep.subr.mxu0 0.0
    %88 = vmatpush1.msra.mxu0 0.0
    %89 = vmatprep.subr.mxu0 0.0
    %90 = vmatpush1.msra.mxu0 0.0
    %91 = vmatprep.subr.mxu0 0.0
    %92 = vmatpush1.msra.mxu0 0.0
    %93 = vmatprep.subr.mxu0 0.0
    %94 = vmatpush1.msra.mxu0 0.0
    %95 = vmatprep.subr.mxu0 0.0
    %96 = vmatpush1.msra.mxu0 0.0
    %97 = vmatprep.subr.mxu0 0.0
    %98 = vmatpush1.msra.mxu0 0.0
    %99 = vmatprep.subr.mxu0 0.0
    %100 = vmatpush1.msra.mxu0 0.0
    %101 = vmatprep.subr.mxu0 0.0
    %102 = vmatpush1.msra.mxu0 0.0
    %103 = vmatprep.subr.mxu0 0.0
    %104 = vmatpush1.msra.mxu0 0.0
    %105 = vmatprep.subr.mxu0 0.0
    %106 = vmatpush1.msra.mxu0 0.0
    %107 = vmatprep.subr.mxu0 0.0
    %108 = vmatpush1.msra.mxu0 0.0
    %109 = vmatprep.subr.mxu0 0.0
    %110 = vmatpush1.msra.mxu0 0.0
    %111 = vmatprep.subr.mxu0 0.0
    %112 = vmatpush1.msra.mxu0 0.0
    %113 = vmatprep.subr.mxu0 0.0
    %114 = vmatpush1.msra.mxu0 0.0
    %115 = vmatprep.subr.mxu0 0.0
    %116 = vmatpush1.msra.mxu0 0.0
    %117 = vmatprep.subr.mxu0 0.0
    %118 = vmatpush1.msra.mxu0 0.0
    %119 = vmatprep.subr.mxu0 0.0
    %120 = vmatpush1.msra.mxu0 0.0
    %121 = vmatprep.subr.mxu0 0.0
    %122 = vmatpush1.msra.mxu0 0.0
    %123 = vmatprep.subr.mxu0 0.0
    %124 = vmatpush1.msra.mxu0 0.0
    %125 = vmatprep.subr.mxu0 0.0
    %126 = vmatpush1.msra.mxu0 0.0
    %127 = vmatprep.mubr.f32.mxu0 0.0
    %128 = vmatmul.mubr.f32.gmra.mrb[0].mxu0 %v58
    %v129 = vpop.f32.mrb[0].mxu0
    %v130 = vadd.f32 %v54, %v129
    %v131 = vpop.f32.mrb[0].mxu0
    %132 = vmatprep.mubr.f32.mxu0 0.0
    %133 = vmatmul.mubr.f32.gmra.mrb[0].mxu0 %v61
    %v134 = vpop.f32.mrb[0].mxu0
    %v135 = vadd.f32 %v54, %v134
    %v136 = vpop.f32.mrb[0].mxu0
    %137 = vdwg.mxu0
    %138 = vst [vmem:[#allocation7] sm:$0xff] %v130
    %139 = vst [vmem:[#allocation7 + $0x8] sm:$0xff] %v135
    // Predicated region
    $region22: #{tpu_custom_call.1} parent=1 // pred_check
      _
    $region23: #{tpu_custom_call.1} parent=1 // pred_check_branch
      %141 = sbr.rel (0) target = $region25
    $region24: #{tpu_custom_call.1} parent=1 // pred_region
      %s143 = ssub.s32 256, 256
      %144 = vsyncadd [#allocation4], %s143
      %s145 = sshll.u32 [#allocation7], 4
      %s146 = int_to_ptr.vmem [resolvable:$true] %s145
      %151 = dma.vmem_to_hbm [thread:$0]  %s146, 256, %s3, [#allocation4], 128, 128, 8
    $region25: #{tpu_custom_call.1} parent=1 // pred_fallthru
      _
    // Predicated region
    $region26: #{tpu_custom_call.1} parent=1 // pred_check
      _
    $region27: #{tpu_custom_call.1} parent=1 // pred_check_branch
      %153 = sbr.rel (0) target = $region29
    $region28: #{tpu_custom_call.1} parent=1 // pred_region
      %154 = dma.done [#allocation4], 256
    $region29: #{tpu_custom_call.1} parent=1 // pred_fallthru
      _
    %155 = vsyncpa [#allocation3], 1
    %156 = vsyncpa [#allocation6], 1
    %157 = vsyncpa [#allocation4], 1

</llo_original>
